<compile_context>
chip_gen: v7x
topology: tpu7x:2x2x1
jax: 0.10.0
libtpu: 0.0.40
codegen_flags: <defaults>
</compile_context>

<pallas_src>
import functools
import math

import jax
import jax.numpy as jnp
from jax import lax
from jax.experimental import pallas as pl
from jax.experimental.pallas import tpu as pltpu


def _round_up(n, m):
    return ((n + m - 1) // m) * m


def _dqn_kernel(x_ref, w1_ref, b1_ref, w2_ref, b2_ref, w3_ref, b3_ref, o_ref):
    # One batch tile (tb rows of x) per grid step; weights/biases are resident.
    # Everything is computed transposed: activations are (features, tb) so the
    # batch dim rides the 128-lane axis (dense vregs, unmasked stores).
    x = x_ref[...].astype(w1_ref.dtype)                       # (tb, state_dim) bf16

    # h1^T = relu(W1 @ x^T + b1)  -> (n_hidden, tb)
    h1 = lax.dot_general(w1_ref[...], x, (((1,), (1,)), ((), ())),
                         preferred_element_type=jnp.float32)
    h1 = jnp.maximum(h1 + b1_ref[...], 0.0).astype(w2_ref.dtype)

    # h2^T = relu(W2 @ h1^T + b2) -> (n_hidden, tb)
    h2 = jnp.dot(w2_ref[...], h1, preferred_element_type=jnp.float32)
    h2 = jnp.maximum(h2 + b2_ref[...], 0.0).astype(w3_ref.dtype)

    # q^T = W3 @ h2^T + b3 -> (num_actions, tb)
    q = jnp.dot(w3_ref[...], h2, preferred_element_type=jnp.float32) + b3_ref[...]
    o_ref[...] = q.astype(o_ref.dtype)


@functools.partial(jax.jit, static_argnames=("block_batch",))
def dqn_forward(x, w1, b1, w2, b2, w3, b3, *, block_batch=2048):
    batch, state_dim = x.shape
    n_hidden = w1.shape[0]
    num_actions = w3.shape[0]

    # --- Batch tiling: balance rows over cdiv(batch, block_batch) tiles so the
    # padding waste is bounded (<128 rows/tile); force >=2 tiles for v7x's two
    # TensorCores once there is enough work.
    n_tiles = pl.cdiv(batch, block_batch)
    if batch >= 256:
        n_tiles = max(n_tiles, 2)
    if n_tiles == 1:
        tb = _round_up(batch, 8)           # single tile: block == full (padded) array
    else:
        tb = _round_up(pl.cdiv(batch, n_tiles), 128)   # lane-dense output blocks
    padded_batch = n_tiles * tb
    xp = jnp.pad(x, ((0, padded_batch - batch), (0, 0))) if padded_batch != batch else x

    flops = 2 * padded_batch * (
        state_dim * n_hidden + n_hidden * n_hidden + n_hidden * num_actions
    )
    bytes_accessed = int(
        xp.size * xp.dtype.itemsize
        + sum(a.size * a.dtype.itemsize for a in (w1, b1, w2, b2, w3, b3))
        + padded_batch * num_actions * 4
    )

    resident = lambda a: pl.BlockSpec(a.shape, lambda i: (0, 0))

    out_t = pl.pallas_call(
        _dqn_kernel,
        out_shape=jax.ShapeDtypeStruct((num_actions, padded_batch), jnp.float32),
        grid=(n_tiles,),
        in_specs=[
            pl.BlockSpec((tb, state_dim), lambda i: (i, 0)),   # x: tiled on batch
            resident(w1), resident(b1),
            resident(w2), resident(b2),
            resident(w3), resident(b3),
        ],
        # Transposed output: batch is the lane axis -> unmasked full-lane stores,
        # and only num_actions rows of writeback.
        out_specs=pl.BlockSpec((num_actions, tb), lambda i: (0, i)),
        compiler_params=pltpu.CompilerParams(
            dimension_semantics=("parallel",),
        ),
        cost_estimate=pl.CostEstimate(
            flops=flops, transcendentals=0, bytes_accessed=bytes_accessed
        ),
    )(xp, w1, b1, w2, b2, w3, b3)

    return out_t[:, :batch].T            # (batch, num_actions)


def init_dqn_params(key, state_dim, n_hidden, num_actions, *, weight_dtype=jnp.bfloat16):
    """PyTorch nn.Linear default init (uniform +-1/sqrt(fan_in)).

    Weights are stored in PyTorch-native (out_features, in_features) layout in
    `weight_dtype` (bf16 for the MXU fast path); biases are (out_features, 1)
    f32 columns, added after f32 accumulation.
    """
    def linear(key, fan_in, fan_out):
        kw, kb = jax.random.split(key)
        bound = 1.0 / math.sqrt(fan_in)
        w = jax.random.uniform(kw, (fan_out, fan_in), jnp.float32, -bound, bound)
        b = jax.random.uniform(kb, (fan_out, 1), jnp.float32, -bound, bound)
        return w.astype(weight_dtype), b

    k1, k2, k3 = jax.random.split(key, 3)
    w1, b1 = linear(k1, state_dim, n_hidden)
    w2, b2 = linear(k2, n_hidden, n_hidden)
    w3, b3 = linear(k3, n_hidden, num_actions)
    return w1, b1, w2, b2, w3, b3


def reference_forward(x, w1, b1, w2, b2, w3, b3):
    """Pure-JAX reference with identical dtype handling (bf16 dots, f32 accum)."""
    h1 = jnp.maximum(
        jnp.dot(x.astype(w1.dtype), w1.T, preferred_element_type=jnp.float32) + b1.T, 0.0)
    h2 = jnp.maximum(
        jnp.dot(h1.astype(w2.dtype), w2.T, preferred_element_type=jnp.float32) + b2.T, 0.0)
    return jnp.dot(h2.astype(w3.dtype), w3.T, preferred_element_type=jnp.float32) + b3.T


if __name__ == "__main__":
    state_dim, n_hidden, num_actions = 16, 32, 4

    key = jax.random.PRNGKey(0)
    kx, kp, kx2 = jax.random.split(key, 3)
    params = init_dqn_params(kp, state_dim, n_hidden, num_actions)

    # Small-shape check (single tile, full-array blocks).
    batch = 8
    x = jax.random.normal(kx, (batch, state_dim), jnp.float32)
    out = jax.block_until_ready(dqn_forward(x, *params))
    ref = reference_forward(x, *params)
    assert out.shape == (batch, num_actions)
    assert jnp.allclose(out, ref, atol=2e-3, rtol=2e-3), "mismatch vs JAX reference (small)"

    # Multi-tile / padded-batch check (exercises the batch grid, weight residency,
    # and the lane-dense transposed output path).
    batch2 = 500
    x2 = jax.random.normal(kx2, (batch2, state_dim), jnp.float32)
    out2 = jax.block_until_ready(dqn_forward(x2, *params, block_batch=128))
    ref2 = reference_forward(x2, *params)
    assert out2.shape == (batch2, num_actions)
    assert jnp.allclose(out2, ref2, atol=2e-3, rtol=2e-3), "mismatch vs JAX reference (tiled)"

    print("KERNEL_OK")
</pallas_src>

<mosaic_0001>
module attributes {stable_mosaic.version = 11 : i64} {
  func.func @_dqn_kernel(%arg0: i32, %arg1: memref<8x16xf32, #tpu.memory_space<vmem>>, %arg2: memref<32x16xbf16, #tpu.memory_space<vmem>>, %arg3: memref<32x1xf32, #tpu.memory_space<vmem>>, %arg4: memref<32x32xbf16, #tpu.memory_space<vmem>>, %arg5: memref<32x1xf32, #tpu.memory_space<vmem>>, %arg6: memref<4x32xbf16, #tpu.memory_space<vmem>>, %arg7: memref<4x1xf32, #tpu.memory_space<vmem>>, %arg8: memref<4x8xf32, #tpu.memory_space<vmem>>) attributes {dimension_semantics = [#tpu.dimension_semantics<parallel>], iteration_bounds = array<i64: 1>, scalar_prefetch = 0 : i64, scratch_operands = 0 : i64, tpu.core_type = #tpu.core_type<tc>, window_params = [{transform_indices = @transform_0, window_bounds = array<i64: 8, 16>}, {pipeline_mode = #tpu.pipeline_mode<synchronous>, transform_indices = @transform_1, window_bounds = array<i64: 32, 16>}, {pipeline_mode = #tpu.pipeline_mode<synchronous>, transform_indices = @transform_2, window_bounds = array<i64: 32, 1>}, {pipeline_mode = #tpu.pipeline_mode<synchronous>, transform_indices = @transform_3, window_bounds = array<i64: 32, 32>}, {pipeline_mode = #tpu.pipeline_mode<synchronous>, transform_indices = @transform_4, window_bounds = array<i64: 32, 1>}, {pipeline_mode = #tpu.pipeline_mode<synchronous>, transform_indices = @transform_5, window_bounds = array<i64: 4, 32>}, {pipeline_mode = #tpu.pipeline_mode<synchronous>, transform_indices = @transform_6, window_bounds = array<i64: 4, 1>}, {transform_indices = @transform_7, window_bounds = array<i64: 4, 8>}]} {
    %c0 = arith.constant 0 : index
    %c0_0 = arith.constant 0 : index
    %0 = vector.load %arg1[%c0, %c0_0] : memref<8x16xf32, #tpu.memory_space<vmem>>, vector<8x16xf32>
    %1 = arith.truncf %0 : vector<8x16xf32> to vector<8x16xbf16>
    %c0_1 = arith.constant 0 : index
    %c0_2 = arith.constant 0 : index
    %2 = vector.load %arg2[%c0_1, %c0_2] : memref<32x16xbf16, #tpu.memory_space<vmem>>, vector<32x16xbf16>
    %cst = arith.constant dense<0.000000e+00> : vector<32x8xf32>
    %3 = tpu.matmul %2, %1, %cst {dimension_numbers = #tpu.dot_dimension_numbers<[1], [1], [0], [0], [0, 0, 1, 0], [], []>} : vector<32x16xbf16>, vector<8x16xbf16>, vector<32x8xf32> -> vector<32x8xf32>
    %c0_3 = arith.constant 0 : index
    %c0_4 = arith.constant 0 : index
    %4 = vector.load %arg3[%c0_3, %c0_4] : memref<32x1xf32, #tpu.memory_space<vmem>>, vector<32x1xf32>
    %5 = vector.broadcast %4 : vector<32x1xf32> to vector<32x8xf32>
    %6 = arith.addf %3, %5 : vector<32x8xf32>
    %cst_5 = arith.constant 0.000000e+00 : f32
    %7 = vector.broadcast %cst_5 : f32 to vector<32x8xf32>
    %8 = arith.maximumf %6, %7 : vector<32x8xf32>
    %9 = arith.truncf %8 : vector<32x8xf32> to vector<32x8xbf16>
    %c0_6 = arith.constant 0 : index
    %c0_7 = arith.constant 0 : index
    %10 = vector.load %arg4[%c0_6, %c0_7] : memref<32x32xbf16, #tpu.memory_space<vmem>>, vector<32x32xbf16>
    %cst_8 = arith.constant dense<0.000000e+00> : vector<32x8xf32>
    %11 = tpu.matmul %10, %9, %cst_8 {dimension_numbers = #tpu.dot_dimension_numbers<[1], [0], [0], [1], [0, 0, 1, 1], [], []>} : vector<32x32xbf16>, vector<32x8xbf16>, vector<32x8xf32> -> vector<32x8xf32>
    %c0_9 = arith.constant 0 : index
    %c0_10 = arith.constant 0 : index
    %12 = vector.load %arg5[%c0_9, %c0_10] : memref<32x1xf32, #tpu.memory_space<vmem>>, vector<32x1xf32>
    %13 = vector.broadcast %12 : vector<32x1xf32> to vector<32x8xf32>
    %14 = arith.addf %11, %13 : vector<32x8xf32>
    %cst_11 = arith.constant 0.000000e+00 : f32
    %15 = vector.broadcast %cst_11 : f32 to vector<32x8xf32>
    %16 = arith.maximumf %14, %15 : vector<32x8xf32>
    %17 = arith.truncf %16 : vector<32x8xf32> to vector<32x8xbf16>
    %c0_12 = arith.constant 0 : index
    %c0_13 = arith.constant 0 : index
    %18 = vector.load %arg6[%c0_12, %c0_13] : memref<4x32xbf16, #tpu.memory_space<vmem>>, vector<4x32xbf16>
    %cst_14 = arith.constant dense<0.000000e+00> : vector<4x8xf32>
    %19 = tpu.matmul %18, %17, %cst_14 {dimension_numbers = #tpu.dot_dimension_numbers<[1], [0], [0], [1], [0, 0, 1, 1], [], []>} : vector<4x32xbf16>, vector<32x8xbf16>, vector<4x8xf32> -> vector<4x8xf32>
    %c0_15 = arith.constant 0 : index
    %c0_16 = arith.constant 0 : index
    %20 = vector.load %arg7[%c0_15, %c0_16] : memref<4x1xf32, #tpu.memory_space<vmem>>, vector<4x1xf32>
    %21 = vector.broadcast %20 : vector<4x1xf32> to vector<4x8xf32>
    %22 = arith.addf %19, %21 : vector<4x8xf32>
    %c0_17 = arith.constant 0 : index
    %c0_18 = arith.constant 0 : index
    %23 = vector.load %arg8[%c0_17, %c0_18] : memref<4x8xf32, #tpu.memory_space<vmem>>, vector<4x8xf32>
    tpu.vector_store %arg8[%c0_17, %c0_18], %22 {strides = array<i32>} : memref<4x8xf32, #tpu.memory_space<vmem>>, vector<4x8xf32>,
    return
  }
  func.func @transform_0(%arg0: i32) -> (i32, i32) {
    %c0_i32 = arith.constant 0 : i32
    %c0_i32_0 = arith.constant 0 : i32
    return %arg0, %c0_i32 : i32, i32
  }
  func.func @transform_1(%arg0: i32) -> (i32, i32) {
    %c0_i32 = arith.constant 0 : i32
    %c0_i32_0 = arith.constant 0 : i32
    %c0_i32_1 = arith.constant 0 : i32
    return %c0_i32, %c0_i32_0 : i32, i32
  }
  func.func @transform_2(%arg0: i32) -> (i32, i32) {
    %c0_i32 = arith.constant 0 : i32
    %c0_i32_0 = arith.constant 0 : i32
    %c0_i32_1 = arith.constant 0 : i32
    return %c0_i32, %c0_i32_0 : i32, i32
  }
  func.func @transform_3(%arg0: i32) -> (i32, i32) {
    %c0_i32 = arith.constant 0 : i32
    %c0_i32_0 = arith.constant 0 : i32
    %c0_i32_1 = arith.constant 0 : i32
    return %c0_i32, %c0_i32_0 : i32, i32
  }
  func.func @transform_4(%arg0: i32) -> (i32, i32) {
    %c0_i32 = arith.constant 0 : i32
    %c0_i32_0 = arith.constant 0 : i32
    %c0_i32_1 = arith.constant 0 : i32
    return %c0_i32, %c0_i32_0 : i32, i32
  }
  func.func @transform_5(%arg0: i32) -> (i32, i32) {
    %c0_i32 = arith.constant 0 : i32
    %c0_i32_0 = arith.constant 0 : i32
    %c0_i32_1 = arith.constant 0 : i32
    return %c0_i32, %c0_i32_0 : i32, i32
  }
  func.func @transform_6(%arg0: i32) -> (i32, i32) {
    %c0_i32 = arith.constant 0 : i32
    %c0_i32_0 = arith.constant 0 : i32
    %c0_i32_1 = arith.constant 0 : i32
    return %c0_i32, %c0_i32_0 : i32, i32
  }
  func.func @transform_7(%arg0: i32) -> (i32, i32) {
    %c0_i32 = arith.constant 0 : i32
    %c0_i32_0 = arith.constant 0 : i32
    return %c0_i32, %arg0 : i32, i32
  }
}

</mosaic_0001>

<llo_original>
// kernel: dqn_forward.1
$region0: #{dqn_forward.1}
  #allocation0 [shape = 'u32[]', space=smem, size = 0x4, offset = 0x4, fixed_abs, tag = 'smem constant byte address 0x4 - core index']
  #allocation1 [shape = 'u32[144,128]{1,0:T(1,128)}', space=vmem, size = 0x12000, scoped, tag = 'internal scratch']
  %s0 = inlined_call_operand.vmem [shape: f32[8,16], index: 0, kind: input, shape index: {}]
  %s1 = inlined_call_operand.vmem [shape: bf16[32,16], index: 1, kind: input, shape index: {}]
  %s2 = inlined_call_operand.vmem [shape: f32[32,1], index: 2, kind: input, shape index: {}]
  %s3 = inlined_call_operand.vmem [shape: bf16[32,32], index: 3, kind: input, shape index: {}]
  %s4 = inlined_call_operand.vmem [shape: f32[32,1], index: 4, kind: input, shape index: {}]
  %s5 = inlined_call_operand.vmem [shape: bf16[4,32], index: 5, kind: input, shape index: {}]
  %s6 = inlined_call_operand.vmem [shape: f32[4,1], index: 6, kind: input, shape index: {}]
  %s7 = inlined_call_operand.hbm [shape: f32[4,8], index: 7, kind: output, shape index: {}]
  %s8 = sld [smem:[#allocation0]]
  $region38: #{dqn_forward.1} parent=0
    _
  %s10 = ssub.s32 1, %s8
  %s11 = scalar_select 0, %s10, %s8
  $region1: #{dqn_forward.1} parent=0
    #allocation2 [shape = 'u8[2048]{0}', space=vmem, size = 0x800, scoped, tag = 'output window, operand 0, single buffered']
    #allocation3 [shape = 's32[1]{0}', space=sflag, size = 0x4, scoped, tag = 'scoped memory for dqn_forward.1']
    %12 = vsyncpa [#allocation3], 0
    // Predicated region
    $region2: #{dqn_forward.1} parent=1 // pred_check
      _
    $region3: #{dqn_forward.1} parent=1 // pred_check_branch
      %14 = sbr.rel (0) target = $region5
    $region4: #{dqn_forward.1} parent=1 // pred_region
      _
    $region5: #{dqn_forward.1} parent=1 // pred_fallthru
      _
    // Predicated region
    $region6: #{dqn_forward.1} parent=1 // pred_check
      _
    $region7: #{dqn_forward.1} parent=1 // pred_check_branch
      %16 = sbr.rel (0) target = $region9
    $region8: #{dqn_forward.1} parent=1 // pred_region
      _
    $region9: #{dqn_forward.1} parent=1 // pred_fallthru
      _
    // Predicated region
    $region10: #{dqn_forward.1} parent=1 // pred_check
      _
    $region11: #{dqn_forward.1} parent=1 // pred_check_branch
      %18 = sbr.rel (0) target = $region13
    $region12: #{dqn_forward.1} parent=1 // pred_region
      _
    $region13: #{dqn_forward.1} parent=1 // pred_fallthru
      _
    // Predicated region
    $region14: #{dqn_forward.1} parent=1 // pred_check
      _
    $region15: #{dqn_forward.1} parent=1 // pred_check_branch
      %20 = sbr.rel (0) target = $region17
    $region16: #{dqn_forward.1} parent=1 // pred_region
      _
    $region17: #{dqn_forward.1} parent=1 // pred_fallthru
      _
    // Predicated region
    $region18: #{dqn_forward.1} parent=1 // pred_check
      _
    $region19: #{dqn_forward.1} parent=1 // pred_check_branch
      %22 = sbr.rel (0) target = $region21
    $region20: #{dqn_forward.1} parent=1 // pred_region
      _
    $region21: #{dqn_forward.1} parent=1 // pred_fallthru
      _
    // Predicated region
    $region22: #{dqn_forward.1} parent=1 // pred_check
      _
    $region23: #{dqn_forward.1} parent=1 // pred_check_branch
      %24 = sbr.rel (0) target = $region25
    $region24: #{dqn_forward.1} parent=1 // pred_region
      _
    $region25: #{dqn_forward.1} parent=1 // pred_fallthru
      _
    // Predicated region
    $region26: #{dqn_forward.1} parent=1 // pred_check
      _
    $region27: #{dqn_forward.1} parent=1 // pred_check_branch
      %26 = sbr.rel (0) target = $region29
    $region28: #{dqn_forward.1} parent=1 // pred_region
      _
    $region29: #{dqn_forward.1} parent=1 // pred_fallthru
      _
    %v28 = vld [vmem:[%s0] sm:$0xff]
    %v29 = vpack.c.bf16 %v28, %v28
    %v30 = vld [vmem:[%s1] sm:$0xf]
    %v31 = vld [vmem:[%s1 + $0x4] sm:$0xf]
    %v32 = vld [vmem:[%s1 + $0x8] sm:$0xf]
    %v33 = vld [vmem:[%s1 + $0xc] sm:$0xf]
    %v34 = vld [vmem:[%s2] sm:$0xff]
    %v35 = vld [vmem:[%s2 + $0x8] sm:$0xff]
    %v36 = vld [vmem:[%s2 + $0x10] sm:$0xff]
    %v37 = vld [vmem:[%s2 + $0x18] sm:$0xff]
    %39 = vset.pattern.permute.xlu0 0
    %40 = vperm.xlu0 %39, %v34
    %v41 = vpop.permute.xlu0 %40
    %44 = vset.pattern.permute.xlu0 0
    %45 = vperm.xlu0 %44, %v35
    %v46 = vpop.permute.xlu0 %45
    %49 = vset.pattern.permute.xlu0 0
    %50 = vperm.xlu0 %49, %v36
    %v51 = vpop.permute.xlu0 %50
    %54 = vset.pattern.permute.xlu0 0
    %55 = vperm.xlu0 %54, %v37
    %v56 = vpop.permute.xlu0 %55
    %v62 = vunpack.c.l.b16 %v30
    %v63 = vunpack.c.l.b16 %v31
    %v64 = vunpack.c.l.b16 %v32
    %v65 = vunpack.c.l.b16 %v33
    %v66 = vpack.c.b16 %v63, %v62
    %v67 = vpack.c.b16 %v65, %v64
    %vm68 = vcmask 130048
    %v70 = vsel %vm68, %v66, 0
    %v73 = vsel %vm68, %v67, 0
    %v76 = vsel %vm68, %v29, 0
    %78 = vmatprep.subr.bf16.mxu0 0
    %79 = vmatpush1.bf16.xpose.msra.mxu0 %v76
    %80 = vmatprep.subr.bf16.mxu0 0
    %81 = vmatpush1.bf16.xpose.msra.mxu0 0
    %82 = vmatprep.subr.bf16.mxu0 0
    %83 = vmatpush1.bf16.xpose.msra.mxu0 0
    %84 = vmatprep.subr.bf16.mxu0 0
    %85 = vmatpush1.bf16.xpose.msra.mxu0 0
    %86 = vmatprep.subr.bf16.mxu0 0
    %87 = vmatpush1.bf16.xpose.msra.mxu0 0
    %88 = vmatprep.subr.bf16.mxu0 0
    %89 = vmatpush1.bf16.xpose.msra.mxu0 0
    %90 = vmatprep.subr.bf16.mxu0 0
    %91 = vmatpush1.bf16.xpose.msra.mxu0 0
    %92 = vmatprep.subr.bf16.mxu0 0
    %93 = vmatpush1.bf16.xpose.msra.mxu0 0
    %94 = vmatprep.subr.bf16.mxu0 0
    %95 = vmatpush1.bf16.xpose.msra.mxu0 0
    %96 = vmatprep.subr.bf16.mxu0 0
    %97 = vmatpush1.bf16.xpose.msra.mxu0 0
    %98 = vmatprep.subr.bf16.mxu0 0
    %99 = vmatpush1.bf16.xpose.msra.mxu0 0
    %100 = vmatprep.subr.bf16.mxu0 0
    %101 = vmatpush1.bf16.xpose.msra.mxu0 0
    %102 = vmatprep.subr.bf16.mxu0 0
    %103 = vmatpush1.bf16.xpose.msra.mxu0 0
    %104 = vmatprep.subr.bf16.mxu0 0
    %105 = vmatpush1.bf16.xpose.msra.mxu0 0
    %106 = vmatprep.subr.bf16.mxu0 0
    %107 = vmatpush1.bf16.xpose.msra.mxu0 0
    %108 = vmatprep.subr.bf16.mxu0 0
    %109 = vmatpush1.bf16.xpose.msra.mxu0 0
    %110 = vmatprep.mubr.bf16.mxu0 0
    %111 = vmatmul.mubr.bf16.gmra.mrb[0].mxu0 %v70
    %v112 = vpop.f32.mrb[0].mxu0
    %v113 = vadd.f32 %v41, %v112
    %v114 = vpop.f32.mrb[0].mxu0
    %v115 = vpop.f32.mrb[0].mxu0
    %v116 = vadd.f32 %v46, %v115
    %v117 = vpop.f32.mrb[0].mxu0
    %118 = vmatprep.mubr.bf16.mxu0 0
    %119 = vmatmul.mubr.bf16.gmra.mrb[0].mxu0 %v73
    %v120 = vpop.f32.mrb[0].mxu0
    %v121 = vadd.f32 %v51, %v120
    %v122 = vpop.f32.mrb[0].mxu0
    %v123 = vpop.f32.mrb[0].mxu0
    %v124 = vadd.f32 %v56, %v123
    %v125 = vpop.f32.mrb[0].mxu0
    %126 = vdwg.mxu0
    %v127 = vmax.f32 %v113, 0.0
    %v128 = vmax.f32 %v116, 0.0
    %v129 = vmax.f32 %v121, 0.0
    %v130 = vmax.f32 %v124, 0.0
    %v131 = vpack.c.bf16 %v128, %v127
    %v132 = vpack.c.bf16 %v130, %v129
    %v133 = vld [vmem:[%s3] sm:$0xf]
    %v134 = vld [vmem:[%s3 + $0x4] sm:$0xf]
    %v135 = vld [vmem:[%s3 + $0x8] sm:$0xf]
    %v136 = vld [vmem:[%s3 + $0xc] sm:$0xf]
    %v137 = vld [vmem:[%s4] sm:$0xff]
    %v138 = vld [vmem:[%s4 + $0x8] sm:$0xff]
    %v139 = vld [vmem:[%s4 + $0x10] sm:$0xff]
    %v140 = vld [vmem:[%s4 + $0x18] sm:$0xff]
    %142 = vset.pattern.permute.xlu0 0
    %143 = vperm.xlu0 %142, %v137
    %v144 = vpop.permute.xlu0 %143
    %147 = vset.pattern.permute.xlu0 0
    %148 = vperm.xlu0 %147, %v138
    %v149 = vpop.permute.xlu0 %148
    %152 = vset.pattern.permute.xlu0 0
    %153 = vperm.xlu0 %152, %v139
    %v154 = vpop.permute.xlu0 %153
    %157 = vset.pattern.permute.xlu0 0
    %158 = vperm.xlu0 %157, %v140
    %v159 = vpop.permute.xlu0 %158
    %v165 = vunpack.c.l.b16 %v133
    %v166 = vunpack.c.l.b16 %v134
    %v167 = vunpack.c.l.b16 %v135
    %v168 = vunpack.c.l.b16 %v136
    %v169 = vpack.c.b16 %v166, %v165
    %v170 = vpack.c.b16 %v168, %v167
    %vm171 = vcmask 261120
    %v173 = vsel %vm171, %v169, 0
    %v176 = vsel %vm171, %v170, 0
    %178 = vmatprep.subr.bf16.mxu0 0
    %179 = vmatpush1.bf16.msra.mxu0 %v131
    %180 = vmatprep.subr.bf16.mxu0 0
    %181 = vmatpush1.bf16.msra.mxu0 %v132
    %182 = vmatprep.subr.bf16.mxu0 0
    %183 = vmatpush1.bf16.msra.mxu0 0
    %184 = vmatprep.subr.bf16.mxu0 0
    %185 = vmatpush1.bf16.msra.mxu0 0
    %186 = vmatprep.subr.bf16.mxu0 0
    %187 = vmatpush1.bf16.msra.mxu0 0
    %188 = vmatprep.subr.bf16.mxu0 0
    %189 = vmatpush1.bf16.msra.mxu0 0
    %190 = vmatprep.subr.bf16.mxu0 0
    %191 = vmatpush1.bf16.msra.mxu0 0
    %192 = vmatprep.subr.bf16.mxu0 0
    %193 = vmatpush1.bf16.msra.mxu0 0
    %194 = vmatprep.subr.bf16.mxu0 0
    %195 = vmatpush1.bf16.msra.mxu0 0
    %196 = vmatprep.subr.bf16.mxu0 0
    %197 = vmatpush1.bf16.msra.mxu0 0
    %198 = vmatprep.subr.bf16.mxu0 0
    %199 = vmatpush1.bf16.msra.mxu0 0
    %200 = vmatprep.subr.bf16.mxu0 0
    %201 = vmatpush1.bf16.msra.mxu0 0
    %202 = vmatprep.subr.bf16.mxu0 0
    %203 = vmatpush1.bf16.msra.mxu0 0
    %204 = vmatprep.subr.bf16.mxu0 0
    %205 = vmatpush1.bf16.msra.mxu0 0
    %206 = vmatprep.subr.bf16.mxu0 0
    %207 = vmatpush1.bf16.msra.mxu0 0
    %208 = vmatprep.subr.bf16.mxu0 0
    %209 = vmatpush1.bf16.msra.mxu0 0
    %210 = vmatprep.mubr.bf16.mxu0 0
    %211 = vmatmul.mubr.bf16.gmra.mrb[0].mxu0 %v173
    %v212 = vpop.f32.mrb[0].mxu0
    %v213 = vadd.f32 %v144, %v212
    %v214 = vpop.f32.mrb[0].mxu0
    %v215 = vpop.f32.mrb[0].mxu0
    %v216 = vadd.f32 %v149, %v215
    %v217 = vpop.f32.mrb[0].mxu0
    %218 = vmatprep.mubr.bf16.mxu0 0
    %219 = vmatmul.mubr.bf16.gmra.mrb[0].mxu0 %v176
    %v220 = vpop.f32.mrb[0].mxu0
    %v221 = vadd.f32 %v154, %v220
    %v222 = vpop.f32.mrb[0].mxu0
    %v223 = vpop.f32.mrb[0].mxu0
    %v224 = vadd.f32 %v159, %v223
    %v225 = vpop.f32.mrb[0].mxu0
    %226 = vdwg.mxu0
    %v227 = vmax.f32 %v213, 0.0
    %v228 = vmax.f32 %v216, 0.0
    %v229 = vmax.f32 %v221, 0.0
    %v230 = vmax.f32 %v224, 0.0
    %v231 = vpack.c.bf16 %v228, %v227
    %v232 = vpack.c.bf16 %v230, %v229
    %v233 = vld [vmem:[%s5] sm:$0x3]
    %v234 = vld [vmem:[%s6] sm:$0xf]
    %236 = vset.pattern.permute.xlu0 0
    %237 = vperm.xlu0 %236, %v234
    %v238 = vpop.permute.xlu0 %237
    %v241 = vsel %vm171, %v233, 0
    %243 = vmatprep.subr.bf16.mxu0 0
    %244 = vmatpush1.bf16.msra.mxu0 %v231
    %245 = vmatprep.subr.bf16.mxu0 0
    %246 = vmatpush1.bf16.msra.mxu0 %v232
    %247 = vmatprep.subr.bf16.mxu0 0
    %248 = vmatpush1.bf16.msra.mxu0 0
    %249 = vmatprep.subr.bf16.mxu0 0
    %250 = vmatpush1.bf16.msra.mxu0 0
    %251 = vmatprep.subr.bf16.mxu0 0
    %252 = vmatpush1.bf16.msra.mxu0 0
    %253 = vmatprep.subr.bf16.mxu0 0
    %254 = vmatpush1.bf16.msra.mxu0 0
    %255 = vmatprep.subr.bf16.mxu0 0
    %256 = vmatpush1.bf16.msra.mxu0 0
    %257 = vmatprep.subr.bf16.mxu0 0
    %258 = vmatpush1.bf16.msra.mxu0 0
    %259 = vmatprep.subr.bf16.mxu0 0
    %260 = vmatpush1.bf16.msra.mxu0 0
    %261 = vmatprep.subr.bf16.mxu0 0
    %262 = vmatpush1.bf16.msra.mxu0 0
    %263 = vmatprep.subr.bf16.mxu0 0
    %264 = vmatpush1.bf16.msra.mxu0 0
    %265 = vmatprep.subr.bf16.mxu0 0
    %266 = vmatpush1.bf16.msra.mxu0 0
    %267 = vmatprep.subr.bf16.mxu0 0
    %268 = vmatpush1.bf16.msra.mxu0 0
    %269 = vmatprep.subr.bf16.mxu0 0
    %270 = vmatpush1.bf16.msra.mxu0 0
    %271 = vmatprep.subr.bf16.mxu0 0
    %272 = vmatpush1.bf16.msra.mxu0 0
    %273 = vmatprep.subr.bf16.mxu0 0
    %274 = vmatpush1.bf16.msra.mxu0 0
    %275 = vmatprep.mubr.bf16.mxu0 0
    %276 = vmatmul.mubr.bf16.gmra.mrb[0].mxu0 %v241
    %v277 = vpop.f32.mrb[0].mxu0
    %v278 = vadd.f32 %v238, %v277
    %v279 = vpop.f32.mrb[0].mxu0
    %v280 = vpop.f32.mrb[0].mxu0
    %v281 = vpop.f32.mrb[0].mxu0
    %282 = vdwg.mxu0
    %vm283 = vcmask 60416
    %284 = vst.msk [vmem:[#allocation2] sm:$0xf] %vm283, %v278
    // Predicated region
    $region30: #{dqn_forward.1} parent=1 // pred_check
      _
    $region31: #{dqn_forward.1} parent=1 // pred_check_branch
      %286 = sbr.rel (0) target = $region33
    $region32: #{dqn_forward.1} parent=1 // pred_region
      %s288 = ssub.s32 64, 64
      %289 = vsyncadd [#allocation3], %s288
      %s291 = sshll.u32 [#allocation2], 4
      %s292 = int_to_ptr.vmem [resolvable:$true] %s291
      %294 = dma.vmem_to_hbm [thread:$0]  %s292, 64, %s7, [#allocation3]
    $region33: #{dqn_forward.1} parent=1 // pred_fallthru
      _
    // Predicated region
    $region34: #{dqn_forward.1} parent=1 // pred_check
      _
    $region35: #{dqn_forward.1} parent=1 // pred_check_branch
      %296 = sbr.rel (0) target = $region37
    $region36: #{dqn_forward.1} parent=1 // pred_region
      %297 = dma.done [#allocation3], 64
    $region37: #{dqn_forward.1} parent=1 // pred_fallthru
      _
    %298 = vsyncpa [#allocation3], 1

</llo_original>
